<compile_context>
chip_gen: v5e
topology: v5e:2x2
jax: 0.10.0
libtpu: 0.0.40
codegen_flags: <defaults>
</compile_context>

<pallas_src>
import jax
import jax.numpy as jnp
from jax.experimental import pallas as pl
from jax.experimental.pallas import tpu as pltpu

_LANES = 128
_MAX_BLOCK_ROWS = 2048   # 2048x128: 1 MiB f32 logits + 0.5 MiB bf16 target / block


def _default_num_chunks():
    """2 chunks on 2-TensorCore chips (v7x), 1 elsewhere."""
    try:
        kind = jax.devices()[0].device_kind.lower()
    except Exception:
        return 1
    return 2 if ("v7" in kind or "tpu7" in kind) else 1


def _make_kernel(rows, br, steps, needs_mask):
    """Builds the streaming-reduction kernel for a fixed tiling."""
    sub = 8 if br % 8 == 0 else br   # accumulator sublane extent

    def kernel(x_ref, t_ref, o_ref):
        ci = pl.program_id(0)
        i = pl.program_id(1)

        @pl.when(i == 0)
        def _():
            o_ref[...] = jnp.zeros_like(o_ref)

        x = x_ref[...].astype(jnp.float32)
        t = t_ref[...].astype(jnp.float32)

        if needs_mask:
            # Rows past the logical end (partial edge block, or a duplicated
            # clamped block) are replaced by the zero-contribution sentinel.
            start = (ci * steps + i) * br
            ridx = jax.lax.broadcasted_iota(jnp.int32, (br, 1), 0)
            valid = (start + ridx) < rows
            x = jnp.where(valid, x, jnp.float32(-1e9))
            t = jnp.where(valid, t, jnp.float32(0.0))

        # Shared-exp stable sigmoid / log-sigmoid.
        neg_abs = -jnp.abs(x)
        ex = jnp.exp(neg_abs)                        # EUP
        sp = jnp.log1p(ex)                           # softplus(-|x|), EUP
        r = pl.reciprocal(1.0 + ex, approx=True)     # EUP vrcp, no Newton tail
        p = jnp.where(x >= 0.0, r, ex * r)           # sigmoid(x)

        # PyTorch nn.BCELoss clamps each log term at -100.
        m = jnp.minimum(x, 0.0)
        log_p = jnp.maximum(m - sp, -100.0)                  # log(sigmoid(x))
        log_1mp = jnp.maximum((neg_abs - m) - sp, -100.0)    # log(1 - sigmoid(x))
        bce = -(log_1mp + t * (log_p - log_1mp))

        if sub == 8:
            def fold(v):   # (br,128) -> (8,128): sublane-aligned VPU adds only
                return jnp.sum(v.reshape(br // 8, 8, _LANES), axis=0)
        else:
            def fold(v):   # tiny-input path: accumulator holds all rows
                return v

        o_ref[0, 0] += fold(p * t)     # intersection
        o_ref[0, 1] += fold(p)         # sum(sigmoid(input))
        o_ref[0, 2] += fold(t)         # sum(target)
        o_ref[0, 3] += fold(bce)       # sum of per-element BCE

    return kernel, sub


def cd_loss(logits, target, *, block_rows=_MAX_BLOCK_ROWS, num_chunks=None,
            target_stream_dtype=jnp.bfloat16):
    """Pallas implementation of cd_loss.forward(input=logits, target=target).

    logits: (N, 1, H, W) raw scores (sigmoid is applied inside the kernel)
    target: (N, Ht, Wt) values in [0, 1] (binary change mask in IFN)
    returns scalar f32: dice_loss + bce_loss
    """
    n, c, h, w = logits.shape
    assert c == 1, "cd_loss expects single-channel logits"
    nt, ht, wt = target.shape
    assert nt == n

    if num_chunks is None:
        num_chunks = _default_num_chunks()

    # F.interpolate(target.unsqueeze(1), size=(H, W), mode='nearest') as one
    # fused gather; streamed as bf16 (exact for 0/1 masks).
    # TODO(synk): for integer H/Ht, W/Wt ratios the low-res target could be
    # replicated in-kernel (XLU/broadcast) instead of materializing the
    # upsampled copy in HBM at all.
    rmap = (jnp.arange(h) * ht) // h
    cmap = (jnp.arange(w) * wt) // w
    t_up = target[:, rmap[:, None], cmap[None, :]]
    if target_stream_dtype is not None:
        t_up = t_up.astype(target_stream_dtype)

    e_true = n * h * w
    x_flat = logits.reshape(-1)
    t_flat = t_up.reshape(-1)

    lane_pad = (-e_true) % _LANES
    if lane_pad:
        # Rare (e % 128 != 0): sentinel logits / zero targets make the padded
        # lanes contribute exactly 0 to every partial sum.
        x_flat = jnp.pad(x_flat, (0, lane_pad), constant_values=-1e9)
        t_flat = jnp.pad(t_flat, (0, lane_pad))

    rows = (e_true + lane_pad) // _LANES
    x_p = x_flat.reshape(rows, _LANES)     # free reshape (contiguous)
    t_p = t_flat.reshape(rows, _LANES)

    if rows <= block_rows:
        br, nc, steps = rows, 1, 1         # single full-extent block
    else:
        br = block_rows                    # multiple of 16 (bf16 tile safe)
        total_blocks = pl.cdiv(rows, br)
        nc = max(1, min(num_chunks, total_blocks))
        steps = pl.cdiv(total_blocks, nc)
    needs_mask = nc * steps * br != rows
    last_block = pl.cdiv(rows, br) - 1

    kernel, sub = _make_kernel(rows, br, steps, needs_mask)

    def in_index(ci, i):
        # Clamp so every grid step maps to an in-range block; steps past the
        # logical end re-fetch the last block and are fully masked in-kernel.
        return (jnp.minimum(ci * steps + i, last_block), 0)

    in_spec = pl.BlockSpec((br, _LANES), in_index)
    out_spec = pl.BlockSpec((1, 4, sub, _LANES), lambda ci, i: (ci, 0, 0, 0))

    bytes_accessed = (x_p.size * x_p.dtype.itemsize
                      + t_p.size * t_p.dtype.itemsize
                      + nc * 4 * sub * _LANES * 4)
    cost = pl.CostEstimate(flops=20 * e_true, transcendentals=3 * e_true,
                           bytes_accessed=int(bytes_accessed))

    partial = pl.pallas_call(
        kernel,
        out_shape=jax.ShapeDtypeStruct((nc, 4, sub, _LANES), jnp.float32),
        grid=(nc, steps),
        in_specs=[in_spec, in_spec],
        out_specs=out_spec,
        compiler_params=pltpu.CompilerParams(
            # TODO(synk): on v7x, pltpu.CORE_PARALLEL on the chunk axis would
            # guarantee the two TensorCores split the reduction.
            dimension_semantics=("parallel", "arbitrary")),
        cost_estimate=cost,
    )(x_p, t_p)

    sums = jnp.sum(partial, axis=(0, 2, 3))          # tiny final reduce in JAX
    intersection, sum_p, sum_t, bce_sum = sums[0], sums[1], sums[2], sums[3]

    bce_loss = bce_sum / jnp.float32(e_true)          # nn.BCELoss mean
    smooth = jnp.float32(1e-10)
    dic_loss = 1.0 - (2.0 * intersection + smooth) / (sum_p + sum_t + smooth)
    return dic_loss + bce_loss


def _reference_cd_loss(logits, target):
    """Pure-JAX reference reproducing the PyTorch semantics."""
    logits = logits.astype(jnp.float32)
    target = target.astype(jnp.float32)
    n, c, h, w = logits.shape
    nt, ht, wt = target.shape
    rmap = (jnp.arange(h) * ht) // h
    cmap = (jnp.arange(w) * wt) // w
    t4 = target[:, rmap[:, None], cmap[None, :]][:, None]   # (N,1,H,W)
    p = jax.nn.sigmoid(logits)
    log_p = jnp.maximum(jnp.log(p), -100.0)
    log_1mp = jnp.maximum(jnp.log1p(-p), -100.0)
    bce = jnp.mean(-(t4 * log_p + (1.0 - t4) * log_1mp))
    iflat = p.reshape(-1)
    tflat = t4.reshape(-1)
    inter = jnp.sum(iflat * tflat)
    smooth = 1e-10
    dic = 1.0 - (2.0 * inter + smooth) / (jnp.sum(iflat) + jnp.sum(tflat) + smooth)
    return dic + bce


if __name__ == "__main__":
    key = jax.random.PRNGKey(0)
    k1, k2, k3, k4, k5, k6 = jax.random.split(key, 6)

    # Tolerance: pl.reciprocal(approx=True) gives ~2^-12 relative error on the
    # sigmoid, which bounds the dice term error well below 1e-3.
    RTOL = ATOL = 2e-3

    # 1) Primary small example: logits (N,1,H,W), binary target (N,Ht,Wt).
    logits = jax.random.normal(k1, (2, 1, 16, 16), dtype=jnp.float32)
    target = jax.random.bernoulli(k2, 0.5, (2, 8, 8)).astype(jnp.float32)
    out = jax.block_until_ready(cd_loss(logits, target))
    ref = jax.block_until_ready(_reference_cd_loss(logits, target))
    assert jnp.allclose(out, ref, rtol=RTOL, atol=ATOL), (out, ref)

    # 2) Unaligned element count (e % 128 != 0) + non-integer interp ratios.
    logits2 = jax.random.normal(k3, (2, 1, 20, 18), dtype=jnp.float32) * 3.0
    target2 = jax.random.bernoulli(k4, 0.3, (2, 7, 5)).astype(jnp.float32)
    out2 = jax.block_until_ready(cd_loss(logits2, target2))
    ref2 = jax.block_until_ready(_reference_cd_loss(logits2, target2))
    assert jnp.allclose(out2, ref2, rtol=RTOL, atol=ATOL), (out2, ref2)

    # 3) Multi-block accumulation + chunk axis + ragged-tail row mask
    #    (block_rows shrunk so a small input exercises the big-input path).
    logits3 = jax.random.normal(k5, (2, 1, 40, 32), dtype=jnp.float32)
    target3 = jax.random.bernoulli(k6, 0.5, (2, 20, 16)).astype(jnp.float32)
    out3 = jax.block_until_ready(
        cd_loss(logits3, target3, block_rows=16, num_chunks=2))
    ref3 = jax.block_until_ready(_reference_cd_loss(logits3, target3))
    assert jnp.allclose(out3, ref3, rtol=RTOL, atol=ATOL), (out3, ref3)

    print("KERNEL_OK")
</pallas_src>

<mosaic_0001>
module attributes {stable_mosaic.version = 11 : i64} {
  func.func @kernel(%arg0: i32, %arg1: i32, %arg2: memref<4x128xf32, #tpu.memory_space<vmem>>, %arg3: memref<4x128xbf16, #tpu.memory_space<vmem>>, %arg4: memref<1x4x4x128xf32, #tpu.memory_space<vmem>>) attributes {dimension_semantics = [#tpu.dimension_semantics<parallel>, #tpu.dimension_semantics<arbitrary>], iteration_bounds = array<i64: 1, 1>, scalar_prefetch = 0 : i64, scratch_operands = 0 : i64, tpu.core_type = #tpu.core_type<tc>, window_params = [{transform_indices = @transform_0, window_bounds = array<i64: 4, 128>}, {transform_indices = @transform_1, window_bounds = array<i64: 4, 128>}, {transform_indices = @transform_2, window_bounds = array<i64: 1, 4, 4, 128>}]} {
    %c0_i32 = arith.constant 0 : i32
    %0 = arith.cmpi eq, %arg1, %c0_i32 : i32
    %1 = arith.extui %0 : i1 to i32
    %c0_i32_0 = arith.constant 0 : i32
    %2 = arith.cmpi ne, %1, %c0_i32_0 : i32
    scf.if %2 {
      %cst_39 = arith.constant 0.000000e+00 : f32
      %57 = vector.broadcast %cst_39 : f32 to vector<1x4x4x128xf32>
      %c0_40 = arith.constant 0 : index
      %c0_41 = arith.constant 0 : index
      %c0_42 = arith.constant 0 : index
      %c0_43 = arith.constant 0 : index
      %58 = vector.load %arg4[%c0_40, %c0_41, %c0_42, %c0_43] : memref<1x4x4x128xf32, #tpu.memory_space<vmem>>, vector<1x4x4x128xf32>
      tpu.vector_store %arg4[%c0_40, %c0_41, %c0_42, %c0_43], %57 {strides = array<i32>} : memref<1x4x4x128xf32, #tpu.memory_space<vmem>>, vector<1x4x4x128xf32>,
    } else {
    }
    %c0 = arith.constant 0 : index
    %c0_1 = arith.constant 0 : index
    %3 = vector.load %arg2[%c0, %c0_1] : memref<4x128xf32, #tpu.memory_space<vmem>>, vector<4x128xf32>
    %c0_2 = arith.constant 0 : index
    %c0_3 = arith.constant 0 : index
    %4 = vector.load %arg3[%c0_2, %c0_3] : memref<4x128xbf16, #tpu.memory_space<vmem>>, vector<4x128xbf16>
    %5 = arith.extf %4 : vector<4x128xbf16> to vector<4x128xf32>
    %6 = math.absf %3 : vector<4x128xf32>
    %cst = arith.constant 0.000000e+00 : f32
    %7 = vector.broadcast %cst : f32 to vector<4x128xf32>
    %8 = arith.subf %7, %6 : vector<4x128xf32>
    %9 = math.exp %8 : vector<4x128xf32>
    %10 = math.log1p %9 : vector<4x128xf32>
    %cst_4 = arith.constant 1.000000e+00 : f32
    %11 = vector.broadcast %cst_4 : f32 to vector<4x128xf32>
    %12 = arith.addf %11, %9 : vector<4x128xf32>
    %13 = tpu.reciprocal %12 {approx = true} : vector<4x128xf32> -> vector<4x128xf32>
    %cst_5 = arith.constant 0.000000e+00 : f32
    %14 = vector.broadcast %cst_5 : f32 to vector<4x128xf32>
    %15 = arith.cmpf oge, %3, %14 : vector<4x128xf32>
    %16 = arith.mulf %9, %13 : vector<4x128xf32>
    %17 = arith.select %15, %13, %16 : vector<4x128xi1>, vector<4x128xf32>
    %cst_6 = arith.constant 0.000000e+00 : f32
    %18 = vector.broadcast %cst_6 : f32 to vector<4x128xf32>
    %19 = arith.minimumf %3, %18 : vector<4x128xf32>
    %20 = arith.subf %19, %10 : vector<4x128xf32>
    %cst_7 = arith.constant -1.000000e+02 : f32
    %21 = vector.broadcast %cst_7 : f32 to vector<4x128xf32>
    %22 = arith.maximumf %20, %21 : vector<4x128xf32>
    %23 = arith.subf %8, %19 : vector<4x128xf32>
    %24 = arith.subf %23, %10 : vector<4x128xf32>
    %cst_8 = arith.constant -1.000000e+02 : f32
    %25 = vector.broadcast %cst_8 : f32 to vector<4x128xf32>
    %26 = arith.maximumf %24, %25 : vector<4x128xf32>
    %27 = arith.subf %22, %26 : vector<4x128xf32>
    %28 = arith.mulf %5, %27 : vector<4x128xf32>
    %29 = arith.addf %26, %28 : vector<4x128xf32>
    %cst_9 = arith.constant 0.000000e+00 : f32
    %30 = vector.broadcast %cst_9 : f32 to vector<4x128xf32>
    %31 = arith.subf %30, %29 : vector<4x128xf32>
    %c0_10 = arith.constant 0 : index
    %c0_11 = arith.constant 0 : index
    %c0_12 = arith.constant 0 : index
    %c0_13 = arith.constant 0 : index
    %32 = vector.load %arg4[%c0_10, %c0_11, %c0_12, %c0_13] : memref<1x4x4x128xf32, #tpu.memory_space<vmem>>, vector<1x1x4x128xf32>
    %33 = vector.shape_cast %32 : vector<1x1x4x128xf32> to vector<4x128xf32>
    %34 = arith.mulf %17, %5 : vector<4x128xf32>
    %35 = arith.addf %33, %34 : vector<4x128xf32>
    %c0_14 = arith.constant 0 : index
    %c0_15 = arith.constant 0 : index
    %c0_16 = arith.constant 0 : index
    %c0_17 = arith.constant 0 : index
    %36 = vector.load %arg4[%c0_14, %c0_15, %c0_16, %c0_17] : memref<1x4x4x128xf32, #tpu.memory_space<vmem>>, vector<1x1x4x128xf32>
    %37 = vector.shape_cast %36 : vector<1x1x4x128xf32> to vector<4x128xf32>
    %38 = vector.shape_cast %35 : vector<4x128xf32> to vector<1x1x4x128xf32>
    tpu.vector_store %arg4[%c0_14, %c0_15, %c0_16, %c0_17], %38 {strides = array<i32>} : memref<1x4x4x128xf32, #tpu.memory_space<vmem>>, vector<1x1x4x128xf32>,
    %c0_18 = arith.constant 0 : index
    %c1 = arith.constant 1 : index
    %c0_19 = arith.constant 0 : index
    %c0_20 = arith.constant 0 : index
    %39 = vector.load %arg4[%c0_18, %c1, %c0_19, %c0_20] : memref<1x4x4x128xf32, #tpu.memory_space<vmem>>, vector<1x1x4x128xf32>
    %40 = vector.shape_cast %39 : vector<1x1x4x128xf32> to vector<4x128xf32>
    %41 = arith.addf %40, %17 : vector<4x128xf32>
    %c0_21 = arith.constant 0 : index
    %c1_22 = arith.constant 1 : index
    %c0_23 = arith.constant 0 : index
    %c0_24 = arith.constant 0 : index
    %42 = vector.load %arg4[%c0_21, %c1_22, %c0_23, %c0_24] : memref<1x4x4x128xf32, #tpu.memory_space<vmem>>, vector<1x1x4x128xf32>
    %43 = vector.shape_cast %42 : vector<1x1x4x128xf32> to vector<4x128xf32>
    %44 = vector.shape_cast %41 : vector<4x128xf32> to vector<1x1x4x128xf32>
    tpu.vector_store %arg4[%c0_21, %c1_22, %c0_23, %c0_24], %44 {strides = array<i32>} : memref<1x4x4x128xf32, #tpu.memory_space<vmem>>, vector<1x1x4x128xf32>,
    %c0_25 = arith.constant 0 : index
    %c2 = arith.constant 2 : index
    %c0_26 = arith.constant 0 : index
    %c0_27 = arith.constant 0 : index
    %45 = vector.load %arg4[%c0_25, %c2, %c0_26, %c0_27] : memref<1x4x4x128xf32, #tpu.memory_space<vmem>>, vector<1x1x4x128xf32>
    %46 = vector.shape_cast %45 : vector<1x1x4x128xf32> to vector<4x128xf32>
    %47 = arith.addf %46, %5 : vector<4x128xf32>
    %c0_28 = arith.constant 0 : index
    %c2_29 = arith.constant 2 : index
    %c0_30 = arith.constant 0 : index
    %c0_31 = arith.constant 0 : index
    %48 = vector.load %arg4[%c0_28, %c2_29, %c0_30, %c0_31] : memref<1x4x4x128xf32, #tpu.memory_space<vmem>>, vector<1x1x4x128xf32>
    %49 = vector.shape_cast %48 : vector<1x1x4x128xf32> to vector<4x128xf32>
    %50 = vector.shape_cast %47 : vector<4x128xf32> to vector<1x1x4x128xf32>
    tpu.vector_store %arg4[%c0_28, %c2_29, %c0_30, %c0_31], %50 {strides = array<i32>} : memref<1x4x4x128xf32, #tpu.memory_space<vmem>>, vector<1x1x4x128xf32>,
    %c0_32 = arith.constant 0 : index
    %c3 = arith.constant 3 : index
    %c0_33 = arith.constant 0 : index
    %c0_34 = arith.constant 0 : index
    %51 = vector.load %arg4[%c0_32, %c3, %c0_33, %c0_34] : memref<1x4x4x128xf32, #tpu.memory_space<vmem>>, vector<1x1x4x128xf32>
    %52 = vector.shape_cast %51 : vector<1x1x4x128xf32> to vector<4x128xf32>
    %53 = arith.addf %52, %31 : vector<4x128xf32>
    %c0_35 = arith.constant 0 : index
    %c3_36 = arith.constant 3 : index
    %c0_37 = arith.constant 0 : index
    %c0_38 = arith.constant 0 : index
    %54 = vector.load %arg4[%c0_35, %c3_36, %c0_37, %c0_38] : memref<1x4x4x128xf32, #tpu.memory_space<vmem>>, vector<1x1x4x128xf32>
    %55 = vector.shape_cast %54 : vector<1x1x4x128xf32> to vector<4x128xf32>
    %56 = vector.shape_cast %53 : vector<4x128xf32> to vector<1x1x4x128xf32>
    tpu.vector_store %arg4[%c0_35, %c3_36, %c0_37, %c0_38], %56 {strides = array<i32>} : memref<1x4x4x128xf32, #tpu.memory_space<vmem>>, vector<1x1x4x128xf32>,
    return
  }
  func.func @transform_0(%arg0: i32, %arg1: i32) -> (i32, i32) {
    %c1_i32 = arith.constant 1 : i32
    %0 = arith.muli %arg0, %c1_i32 : i32
    %1 = arith.addi %0, %arg1 : i32
    %c0_i32 = arith.constant 0 : i32
    %2 = arith.minsi %1, %c0_i32 : i32
    %c0_i32_0 = arith.constant 0 : i32
    %c0_i32_1 = arith.constant 0 : i32
    return %2, %c0_i32_0 : i32, i32
  }
  func.func @transform_1(%arg0: i32, %arg1: i32) -> (i32, i32) {
    %c1_i32 = arith.constant 1 : i32
    %0 = arith.muli %arg0, %c1_i32 : i32
    %1 = arith.addi %0, %arg1 : i32
    %c0_i32 = arith.constant 0 : i32
    %2 = arith.minsi %1, %c0_i32 : i32
    %c0_i32_0 = arith.constant 0 : i32
    %c0_i32_1 = arith.constant 0 : i32
    return %2, %c0_i32_0 : i32, i32
  }
  func.func @transform_2(%arg0: i32, %arg1: i32) -> (i32, i32, i32, i32) {
    %c0_i32 = arith.constant 0 : i32
    %c0_i32_0 = arith.constant 0 : i32
    %c0_i32_1 = arith.constant 0 : i32
    %c0_i32_2 = arith.constant 0 : i32
    return %arg0, %c0_i32, %c0_i32_0, %c0_i32_1 : i32, i32, i32, i32
  }
}

</mosaic_0001>

<llo_original>
// kernel: tpu_custom_call.1
$region0: #{tpu_custom_call.1}
  #allocation0 [shape = 'u32[]', space=smem, size = 0x4, offset = 0x4, fixed_abs, tag = 'smem constant byte address 0x4 - core index']
  #allocation1 [shape = 'u32[72,128]{1,0:T(1,128)}', space=vmem, size = 0x9000, scoped, tag = 'internal scratch']
  %s0 = inlined_call_operand.hbm [shape: f32[4,128], index: 0, kind: input, shape index: {}]
  %s1 = inlined_call_operand.hbm [shape: bf16[4,128], index: 1, kind: input, shape index: {}]
  %s2 = inlined_call_operand.hbm [shape: f32[1,4,4,128], index: 2, kind: output, shape index: {}]
  %s3 = sld [smem:[#allocation0]]
  $region30: #{tpu_custom_call.1} parent=0
    _
  %s5 = ssub.s32 1, %s3
  %s6 = scalar_select 0, %s5, %s3
  $region1: #{tpu_custom_call.1} parent=0
    #allocation2 [shape = 'u8[2048]{0}', space=vmem, size = 0x800, scoped, tag = 'input window, operand 0, single buffered']
    #allocation3 [shape = 's32[1]{0}', space=sflag, size = 0x4, scoped, tag = 'scoped memory for tpu_custom_call.1']
    #allocation4 [shape = 's32[1]{0}', space=sflag, size = 0x4, scoped, tag = 'scoped memory for tpu_custom_call.1']
    #allocation5 [shape = 'u8[1024]{0}', space=vmem, size = 0x400, scoped, tag = 'input window, operand 1, single buffered']
    #allocation6 [shape = 's32[1]{0}', space=sflag, size = 0x4, scoped, tag = 'scoped memory for tpu_custom_call.1']
    #allocation7 [shape = 'u8[8192]{0}', space=vmem, size = 0x2000, scoped, tag = 'output window, operand 0, single buffered']
    %7 = vsyncpa [#allocation3], 0
    %8 = vsyncpa [#allocation6], 0
    %9 = vsyncpa [#allocation4], 0
    // Predicated region
    $region2: #{tpu_custom_call.1} parent=1 // pred_check
      _
    $region3: #{tpu_custom_call.1} parent=1 // pred_check_branch
      %11 = sbr.rel (0) target = $region5
    $region4: #{tpu_custom_call.1} parent=1 // pred_region
      %s12 = sadd.s32 0, 0
      %p13 = scmp.lt.s32.totalorder %s12, 0
      %s14 = scalar_select %p13, %s12, 0
      %16 = vsyncadd [#allocation3], 0
      %s17 = smul.addr %s14, 4
      %s18 = scalar_lea.hbm %s0, %s17
      %s20 = sshll.u32 %s18, 4
      %s21 = int_to_ptr.hbm [resolvable:$true] %s20
      %s22 = sshll.u32 [#allocation2], 4
      %s23 = int_to_ptr.vmem [resolvable:$true] %s22
      %25 = dma.hbm_to_vmem [thread:$0]  %s21, 64, %s23, [#allocation3]
    $region5: #{tpu_custom_call.1} parent=1 // pred_fallthru
      _
    // Predicated region
    $region6: #{tpu_custom_call.1} parent=1 // pred_check
      _
    $region7: #{tpu_custom_call.1} parent=1 // pred_check_branch
      %27 = sbr.rel (0) target = $region9
    $region8: #{tpu_custom_call.1} parent=1 // pred_region
      %s28 = sadd.s32 0, 0
      %p29 = scmp.lt.s32.totalorder %s28, 0
      %s30 = scalar_select %p29, %s28, 0
      %32 = vsyncadd [#allocation6], 0
      %s33 = smul.addr %s30, 2
      %s34 = scalar_lea.hbm %s1, %s33
      %s36 = sshll.u32 %s34, 4
      %s37 = int_to_ptr.hbm [resolvable:$true] %s36
      %s38 = sshll.u32 [#allocation5], 4
      %s39 = int_to_ptr.vmem [resolvable:$true] %s38
      %41 = dma.hbm_to_vmem [thread:$0]  %s37, 32, %s39, [#allocation6]
    $region9: #{tpu_custom_call.1} parent=1 // pred_fallthru
      _
    // Predicated region
    $region10: #{tpu_custom_call.1} parent=1 // pred_check
      _
    $region11: #{tpu_custom_call.1} parent=1 // pred_check_branch
      %43 = sbr.rel (0) target = $region13
    $region12: #{tpu_custom_call.1} parent=1 // pred_region
      %45 = dma.done [#allocation3], 64
    $region13: #{tpu_custom_call.1} parent=1 // pred_fallthru
      _
    // Predicated region
    $region14: #{tpu_custom_call.1} parent=1 // pred_check
      _
    $region15: #{tpu_custom_call.1} parent=1 // pred_check_branch
      %47 = sbr.rel (0) target = $region17
    $region16: #{tpu_custom_call.1} parent=1 // pred_region
      %49 = dma.done [#allocation6], 32
    $region17: #{tpu_custom_call.1} parent=1 // pred_fallthru
      _
    %s50 = sadd.s32 0, 0
    %p51 = scmp.lt.s32.totalorder %s50, 0
    %s52 = scalar_select %p51, %s50, 0
    %s53 = sadd.s32 0, 0
    %p54 = scmp.lt.s32.totalorder %s53, 0
    %s55 = scalar_select %p54, %s53, 0
    %p56 = scmp.eq.s32.totalorder 0, 0
    // Predicated region
    $region18: #{tpu_custom_call.1} parent=1 // pred_check
      %p57 = pneg %p56
    $region19: #{tpu_custom_call.1} parent=1 // pred_check_branch
      %59 = sbr.rel (%p57) target = $region21
    $region20: #{tpu_custom_call.1} parent=1 // pred_region
      %60 = vst [vmem:[#allocation7] sm:$0xf] 0.0
      %61 = vst [vmem:[#allocation7 + $0x4] sm:$0xf] 0.0
      %62 = vst [vmem:[#allocation7 + $0x8] sm:$0xf] 0.0
      %63 = vst [vmem:[#allocation7 + $0xc] sm:$0xf] 0.0
    $region21: #{tpu_custom_call.1} parent=1 // pred_fallthru
      _
    %v64 = vld [vmem:[#allocation2] sm:$0xf]
    %v65 = vld [vmem:[#allocation5] sm:$0x3]
    %v66 = vunpack.c.l.bf16 %v65
    %v67 = vand.u32 2147483647, %v64
    %v68 = vsub.f32 0.0, %v67
    %v69 = vmul.f32 %v68, 1.442695
    %v70 = vpow.pop %v69
    %v71 = vadd.f32 %v70, 1.0
    %v72 = vlog2.pop %v71
    %v73 = vmul.f32 %v72, 0.6931472
    %v74 = vmul.f32 -0.5, %v70
    %v75 = vadd.f32 %v74, 1.0
    %v76 = vmul.f32 %v75, %v70
    %v77 = vand.u32 2147483647, %v70
    %vm78 = vcmp.lt.f32.partialorder %v77, 0.0004427343
    %v79 = vsel %vm78, %v76, %v73
    %v80 = vadd.f32 %v70, 1.0
    %v81 = vrcp.pop %v80
    %vm82 = vcmp.ge.f32.partialorder %v64, 0.0
    %v83 = vmul.f32 %v70, %v81
    %v84 = vsel %vm82, %v81, %v83
    %v85 = vmin.f32 %v64, 0.0
    %v86 = vsub.f32 %v85, %v79
    %v87 = vmax.f32 %v86, -100.0
    %v88 = vsub.f32 %v68, %v85
    %v89 = vsub.f32 %v88, %v79
    %v90 = vmax.f32 %v89, -100.0
    %v91 = vsub.f32 %v87, %v90
    %v92 = vmul.f32 %v66, %v91
    %v93 = vadd.f32 %v90, %v92
    %v94 = vsub.f32 0.0, %v93
    %v95 = vld [vmem:[#allocation7] sm:$0xf]
    %v96 = vmul.f32 %v84, %v66
    %v97 = vadd.f32 %v95, %v96
    %98 = vst [vmem:[#allocation7] sm:$0xf] %v97
    %s99 = scalar_lea.vmem [#allocation7], 4
    %v100 = vld [vmem:[%s99] sm:$0xf]
    %v101 = vadd.f32 %v100, %v84
    %102 = vst [vmem:[%s99] sm:$0xf] %v101
    %s103 = scalar_lea.vmem [#allocation7], 8
    %v104 = vld [vmem:[%s103] sm:$0xf]
    %v105 = vadd.f32 %v104, %v66
    %106 = vst [vmem:[%s103] sm:$0xf] %v105
    %s107 = scalar_lea.vmem [#allocation7], 12
    %v108 = vld [vmem:[%s107] sm:$0xf]
    %v109 = vadd.f32 %v108, %v94
    %110 = vst [vmem:[%s107] sm:$0xf] %v109
    // Predicated region
    $region22: #{tpu_custom_call.1} parent=1 // pred_check
      _
    $region23: #{tpu_custom_call.1} parent=1 // pred_check_branch
      %112 = sbr.rel (0) target = $region25
    $region24: #{tpu_custom_call.1} parent=1 // pred_region
      %114 = vsyncadd [#allocation4], 0
      %s115 = sshll.u32 [#allocation7], 4
      %s116 = int_to_ptr.vmem [resolvable:$true] %s115
      %s117 = sshll.u32 %s2, 4
      %s118 = int_to_ptr.hbm [resolvable:$true] %s117
      %123 = dma.vmem_to_hbm [thread:$0]  %s116, 256, %s118, [#allocation4], 64, 64, 4
    $region25: #{tpu_custom_call.1} parent=1 // pred_fallthru
      _
    // Predicated region
    $region26: #{tpu_custom_call.1} parent=1 // pred_check
      _
    $region27: #{tpu_custom_call.1} parent=1 // pred_check_branch
      %125 = sbr.rel (0) target = $region29
    $region28: #{tpu_custom_call.1} parent=1 // pred_region
      %127 = dma.done [#allocation4], 256
    $region29: #{tpu_custom_call.1} parent=1 // pred_fallthru
      _
    %128 = vsyncpa [#allocation3], 1
    %129 = vsyncpa [#allocation6], 1
    %130 = vsyncpa [#allocation4], 1

</llo_original>
